<compile_context>
chip_gen: v7x
topology: tpu7x:2x2x1
jax: 0.10.0
libtpu: 0.0.40
codegen_flags: <defaults>
</compile_context>

<pallas_src>
import jax
import jax.numpy as jnp
from jax.experimental import pallas as pl
from jax.experimental.pallas import tpu as pltpu


# ----------------------------------------------------------------------------
# Kernel: the whole ResnetBlock forward on one (C, TL) NCL tile
# ----------------------------------------------------------------------------
def _resnet_block_kernel(x_ref, w_ref, b_ref, o_ref):
    """Fused: relu(W@ relu(W@ relu(W@x + b) + b) + b + x)   (channels-first).

    x_ref: (C, TL)  f32   one batch sample, TL consecutive positions (lanes)
    w_ref: (C, C)   bf16  conv1 1x1 kernel as (C_out, C_in)
    b_ref: (C, 1)   f32   conv1 bias (broadcast over lanes)
    o_ref: (C, TL)  f32
    All three "conv" applications reuse the same weight/bias, exactly as the
    reference forward (it calls self.conv1 three times).
    """
    w = w_ref[...]                               # bf16, VMEM-resident (constant idx map)
    b = b_ref[...]                               # f32
    h = jnp.maximum(
        jnp.dot(w, x_ref[...].astype(jnp.bfloat16),
                preferred_element_type=jnp.float32) + b, 0.0)
    h = jnp.maximum(
        jnp.dot(w, h.astype(jnp.bfloat16),
                preferred_element_type=jnp.float32) + b, 0.0)
    # Residual: re-read the (already resident) input tile in f32 at the add so
    # x's live range does not span all three matmuls.
    o = jnp.maximum(
        jnp.dot(w, h.astype(jnp.bfloat16),
                preferred_element_type=jnp.float32) + b + x_ref[...], 0.0)
    o_ref[...] = o.astype(o_ref.dtype)


# ----------------------------------------------------------------------------
# Tile sizing (generation-aware) and wrapper
# ----------------------------------------------------------------------------
def _vmem_budget_bytes():
    try:
        cap = pltpu.get_tpu_info().vmem_capacity_bytes   # 64 MiB v7x, 128 MiB v5e/v6e
    except Exception:                                    # query unavailable -> be safe
        cap = 64 * 1024 * 1024
    return cap // 2                                      # headroom for compiler scratch


def _pick_tile_l(N, L, C, elt_bytes=4):
    """Largest lane-dense L-tile that keeps double-buffered in/out tiles in VMEM."""
    budget = _vmem_budget_bytes()
    fixed = 2 * (C * C * 2 + C * 4)                      # bf16 weight + f32 bias (2 bufs)
    avail = max(budget - fixed, C * 128 * elt_bytes)
    cap = max(avail // (4 * C * elt_bytes), 128)         # 2 bufs x (in + out) tiles
    if L % 128 != 0:
        # Ragged L: take the full length as one block (no pad/slice HBM passes).
        # TODO(synk): mask a ragged tail in-kernel if L ever outgrows VMEM here.
        tl = L
    elif L <= cap:
        tl = L
    else:
        tl = (min(cap, L) // 128) * 128
        while tl > 128 and L % tl != 0:                  # need tl | L, multiple of 128
            tl -= 128
    # v7x megacore: ensure >= 2 parallel grid steps so both TensorCores get work.
    if N * (L // tl) < 2 and L % 256 == 0:
        tl = L // 2
    return tl, budget


def resnet_block_forward(params, x_ncl):
    """x_ncl: (N, C, L) in PyTorch NCL layout.  Returns (N, C, L)."""
    w, b = params["conv1"]                               # (C_out, C_in), (C_out, 1)
    N, C, L = x_ncl.shape
    assert w.shape == (C, C) and b.shape == (C, 1)

    x = x_ncl.astype(jnp.float32)
    w_bf16 = w.astype(jnp.bfloat16)                      # cast once, halves weight traffic

    TL, vmem_budget = _pick_tile_l(N, L, C)
    grid = (N, L // TL)

    cost = pl.CostEstimate(
        flops=3 * 2 * N * L * C * C,
        transcendentals=0,
        bytes_accessed=2 * N * C * L * 4 + C * C * 2 + C * 4,
    )

    # Weight/bias have constant index_maps so they are DMA'd only once and stay
    # VMEM-resident across the grid (their double-buffer cost is tiny and is
    # already accounted for in the tile-size budget).
    out = pl.pallas_call(
        _resnet_block_kernel,
        out_shape=jax.ShapeDtypeStruct((N, C, L), jnp.float32),
        grid=grid,
        in_specs=[
            pl.BlockSpec((None, C, TL), lambda n, l: (n, 0, l)),   # x tile -> (C, TL)
            pl.BlockSpec((C, C), lambda n, l: (0, 0)),             # weight (bf16)
            pl.BlockSpec((C, 1), lambda n, l: (0, 0)),             # bias   (f32)
        ],
        out_specs=pl.BlockSpec((None, C, TL), lambda n, l: (n, 0, l)),
        compiler_params=pltpu.CompilerParams(
            dimension_semantics=("parallel", "parallel"),          # shard across TCs
            vmem_limit_bytes=int(vmem_budget),
        ),
        cost_estimate=cost,
    )(x, w_bf16, b)
    return out


# ----------------------------------------------------------------------------
# Parameters (PyTorch-style uniform fan-in init) and a pure-JAX reference
# ----------------------------------------------------------------------------
def init_params(key, conv_dim):
    # conv1 = nn.Conv1d(conv_dim, conv_dim, kernel_size=1, stride=1, padding=0)
    # weight (C_out, C_in, 1) stored as (C_out, C_in); bias as (C_out, 1).
    kw, kb = jax.random.split(key)
    bound = 1.0 / (conv_dim * 1) ** 0.5
    w = jax.random.uniform(kw, (conv_dim, conv_dim), jnp.float32, -bound, bound)
    b = jax.random.uniform(kb, (conv_dim, 1), jnp.float32, -bound, bound)
    # NOTE: the reference module also builds conv2/conv3 in __init__, but its
    # forward never uses them (it calls self.conv1 three times), so they are
    # intentionally not instantiated here.
    return {"conv1": (w, b)}


def _reference_forward(params, x_ncl):
    """Pure-JAX (f32) reference of ResnetBlock.forward for correctness checking."""
    w, b = params["conv1"]
    x = x_ncl.astype(jnp.float32)
    bb = b[None]                                              # (1, C, 1)
    h = jnp.maximum(jnp.einsum("oc,ncl->nol", w, x) + bb, 0.0)
    h = jnp.maximum(jnp.einsum("oc,ncl->nol", w, h) + bb, 0.0)
    return jnp.maximum(jnp.einsum("oc,ncl->nol", w, h) + bb + x, 0.0)


# ----------------------------------------------------------------------------
if __name__ == "__main__":
    key = jax.random.PRNGKey(0)
    kx, kp = jax.random.split(key)

    N, conv_dim, L = 2, 32, 16
    x = jax.random.normal(kx, (N, conv_dim, L), jnp.float32)   # PyTorch NCL input
    params = init_params(kp, conv_dim)

    out = jax.block_until_ready(resnet_block_forward(params, x))

    assert out.shape == (N, conv_dim, L), out.shape
    assert bool(jnp.all(jnp.isfinite(out)))

    ref = _reference_forward(params, x)
    # bf16 MXU operands (f32 accumulation) -> a few 1e-3 of absolute error vs
    # the pure-f32 reference across the three chained matmuls.
    assert bool(jnp.allclose(out, ref, atol=3e-2, rtol=3e-2)), "mismatch vs reference"

    print("KERNEL_OK")
</pallas_src>

<mosaic_0001>
module attributes {stable_mosaic.version = 11 : i64} {
  func.func @_resnet_block_kernel(%arg0: i32, %arg1: i32, %arg2: memref<1x32x16xf32, #tpu.memory_space<vmem>>, %arg3: memref<32x32xbf16, #tpu.memory_space<vmem>>, %arg4: memref<32x1xf32, #tpu.memory_space<vmem>>, %arg5: memref<1x32x16xf32, #tpu.memory_space<vmem>>) attributes {dimension_semantics = [#tpu.dimension_semantics<parallel>, #tpu.dimension_semantics<parallel>], iteration_bounds = array<i64: 2, 1>, scalar_prefetch = 0 : i64, scratch_operands = 0 : i64, tpu.core_type = #tpu.core_type<tc>, window_params = [{transform_indices = @transform_0, window_bounds = array<i64: 1, 32, 16>}, {pipeline_mode = #tpu.pipeline_mode<synchronous>, transform_indices = @transform_1, window_bounds = array<i64: 32, 32>}, {pipeline_mode = #tpu.pipeline_mode<synchronous>, transform_indices = @transform_2, window_bounds = array<i64: 32, 1>}, {transform_indices = @transform_3, window_bounds = array<i64: 1, 32, 16>}]} {
    %c0 = arith.constant 0 : index
    %c0_0 = arith.constant 0 : index
    %0 = vector.load %arg3[%c0, %c0_0] : memref<32x32xbf16, #tpu.memory_space<vmem>>, vector<32x32xbf16>
    %c0_1 = arith.constant 0 : index
    %c0_2 = arith.constant 0 : index
    %1 = vector.load %arg4[%c0_1, %c0_2] : memref<32x1xf32, #tpu.memory_space<vmem>>, vector<32x1xf32>
    %c0_3 = arith.constant 0 : index
    %c0_4 = arith.constant 0 : index
    %c0_5 = arith.constant 0 : index
    %2 = vector.load %arg2[%c0_3, %c0_4, %c0_5] : memref<1x32x16xf32, #tpu.memory_space<vmem>>, vector<1x32x16xf32>
    %3 = vector.shape_cast %2 : vector<1x32x16xf32> to vector<32x16xf32>
    %4 = arith.truncf %3 : vector<32x16xf32> to vector<32x16xbf16>
    %cst = arith.constant dense<0.000000e+00> : vector<32x16xf32>
    %5 = tpu.matmul %0, %4, %cst {dimension_numbers = #tpu.dot_dimension_numbers<[1], [0], [0], [1], [0, 0, 1, 1], [], []>} : vector<32x32xbf16>, vector<32x16xbf16>, vector<32x16xf32> -> vector<32x16xf32>
    %6 = vector.broadcast %1 : vector<32x1xf32> to vector<32x16xf32>
    %7 = arith.addf %5, %6 : vector<32x16xf32>
    %cst_6 = arith.constant 0.000000e+00 : f32
    %8 = vector.broadcast %cst_6 : f32 to vector<32x16xf32>
    %9 = arith.maximumf %7, %8 : vector<32x16xf32>
    %10 = arith.truncf %9 : vector<32x16xf32> to vector<32x16xbf16>
    %cst_7 = arith.constant dense<0.000000e+00> : vector<32x16xf32>
    %11 = tpu.matmul %0, %10, %cst_7 {dimension_numbers = #tpu.dot_dimension_numbers<[1], [0], [0], [1], [0, 0, 1, 1], [], []>} : vector<32x32xbf16>, vector<32x16xbf16>, vector<32x16xf32> -> vector<32x16xf32>
    %12 = vector.broadcast %1 : vector<32x1xf32> to vector<32x16xf32>
    %13 = arith.addf %11, %12 : vector<32x16xf32>
    %cst_8 = arith.constant 0.000000e+00 : f32
    %14 = vector.broadcast %cst_8 : f32 to vector<32x16xf32>
    %15 = arith.maximumf %13, %14 : vector<32x16xf32>
    %16 = arith.truncf %15 : vector<32x16xf32> to vector<32x16xbf16>
    %cst_9 = arith.constant dense<0.000000e+00> : vector<32x16xf32>
    %17 = tpu.matmul %0, %16, %cst_9 {dimension_numbers = #tpu.dot_dimension_numbers<[1], [0], [0], [1], [0, 0, 1, 1], [], []>} : vector<32x32xbf16>, vector<32x16xbf16>, vector<32x16xf32> -> vector<32x16xf32>
    %18 = vector.broadcast %1 : vector<32x1xf32> to vector<32x16xf32>
    %19 = arith.addf %17, %18 : vector<32x16xf32>
    %c0_10 = arith.constant 0 : index
    %c0_11 = arith.constant 0 : index
    %c0_12 = arith.constant 0 : index
    %20 = vector.load %arg2[%c0_10, %c0_11, %c0_12] : memref<1x32x16xf32, #tpu.memory_space<vmem>>, vector<1x32x16xf32>
    %21 = vector.shape_cast %20 : vector<1x32x16xf32> to vector<32x16xf32>
    %22 = arith.addf %19, %21 : vector<32x16xf32>
    %cst_13 = arith.constant 0.000000e+00 : f32
    %23 = vector.broadcast %cst_13 : f32 to vector<32x16xf32>
    %24 = arith.maximumf %22, %23 : vector<32x16xf32>
    %c0_14 = arith.constant 0 : index
    %c0_15 = arith.constant 0 : index
    %c0_16 = arith.constant 0 : index
    %25 = vector.load %arg5[%c0_14, %c0_15, %c0_16] : memref<1x32x16xf32, #tpu.memory_space<vmem>>, vector<1x32x16xf32>
    %26 = vector.shape_cast %25 : vector<1x32x16xf32> to vector<32x16xf32>
    %27 = vector.shape_cast %24 : vector<32x16xf32> to vector<1x32x16xf32>
    tpu.vector_store %arg5[%c0_14, %c0_15, %c0_16], %27 {strides = array<i32>} : memref<1x32x16xf32, #tpu.memory_space<vmem>>, vector<1x32x16xf32>,
    return
  }
  func.func @transform_0(%arg0: i32, %arg1: i32) -> (i32, i32, i32) {
    %c0_i32 = arith.constant 0 : i32
    %c0_i32_0 = arith.constant 0 : i32
    return %arg0, %c0_i32, %arg1 : i32, i32, i32
  }
  func.func @transform_1(%arg0: i32, %arg1: i32) -> (i32, i32) {
    %c0_i32 = arith.constant 0 : i32
    %c0_i32_0 = arith.constant 0 : i32
    %c0_i32_1 = arith.constant 0 : i32
    return %c0_i32, %c0_i32_0 : i32, i32
  }
  func.func @transform_2(%arg0: i32, %arg1: i32) -> (i32, i32) {
    %c0_i32 = arith.constant 0 : i32
    %c0_i32_0 = arith.constant 0 : i32
    %c0_i32_1 = arith.constant 0 : i32
    return %c0_i32, %c0_i32_0 : i32, i32
  }
  func.func @transform_3(%arg0: i32, %arg1: i32) -> (i32, i32, i32) {
    %c0_i32 = arith.constant 0 : i32
    %c0_i32_0 = arith.constant 0 : i32
    return %arg0, %c0_i32, %arg1 : i32, i32, i32
  }
}

</mosaic_0001>

<llo_original>
// kernel: tpu_custom_call.1
$region0: #{tpu_custom_call.1}
  #allocation0 [shape = 'u32[]', space=smem, size = 0x4, offset = 0x4, fixed_abs, tag = 'smem constant byte address 0x4 - core index']
  #allocation1 [shape = 'u32[144,128]{1,0:T(1,128)}', space=vmem, size = 0x12000, scoped, tag = 'internal scratch']
  %s0 = inlined_call_operand.vmem [shape: f32[2,32,16], index: 0, kind: input, shape index: {}]
  %s1 = inlined_call_operand.vmem [shape: bf16[32,32], index: 1, kind: input, shape index: {}]
  %s2 = inlined_call_operand.vmem [shape: f32[32,1], index: 2, kind: input, shape index: {}]
  %s3 = inlined_call_operand.vmem [shape: f32[2,32,16], index: 3, kind: output, shape index: {}]
  %s4 = sld [smem:[#allocation0]]
  $region45: #{tpu_custom_call.1} parent=0
    _
  %s6 = ssub.s32 1, %s4
  %s7 = scalar_select 0, %s6, %s4
  loop: start=0, step=1, limit=4
  $region2: #{tpu_custom_call.1} parent=0 // loop_pre_header
    _
  $region3: #{tpu_custom_call.1} parent=0 // loop_header
    %s9 = sphi 0, %s13
    %p10 = scmp.ge.s32.totalorder %s9, 4
    %s16 = sphi 0, %s28
    %s17 = sphi 0, %s24
    %s18 = sphi 0, %s16
    %s19 = sphi 0, %s17
    %s20 = sphi 0, %s18
    %s21 = sphi 0, %s19
    %s33 = sphi 0, %s35
    %s36 = sphi 0, %s33
    %s37 = sphi 0, %s36
    %s53 = sphi 0, %s37
    %s57 = sphi 0, %s57
    %s59 = sphi 0, %s57
    %s60 = sphi 0, %s59
    %s74 = sphi 0, %s60
    %s78 = sphi 0, %s78
    %s80 = sphi 0, %s78
    %s81 = sphi 0, %s80
    %s95 = sphi 0, %s81
    %s103 = sphi 0, %s105
    %s106 = sphi 0, %s103
    %s107 = sphi 0, %s106
    %s123 = sphi 0, %s107
  $region4: #{tpu_custom_call.1} parent=0 // loop_header_branch
    %12 = sbr.rel (%p10) target = $region8
  $region5: #{tpu_custom_call.1} parent=0 // loop_body
    %s14 = ssub.s32 %s9, 1
    %s15 = ssub.s32 %s9, 2
    %s22 = sadd.s32 1, %s17
    %p23 = scmp.ge.s32.totalorder %s22, 1
    %s24 = scalar_select %p23, 0, %s22
    %s25 = sadd.s32 1, %s16
    %s26 = scalar_select %p23, %s25, %s16
    %p27 = scmp.ge.s32.totalorder %s26, 2
    %s28 = scalar_select %p27, 0, %s26
    %s29 = ssub.s32 %s16, %s28
    %s30 = ssub.s32 %s17, %s24
    %s31 = sor.u32 %s29, %s30
    %p32 = scmp.eq.s32.totalorder %s31, 0
    %s34 = sadd.s32 %s33, 1
    %s35 = scalar_select %p32, %s33, %s34
    %p38 = pneg %p32
    %p39 = scmp.eq.s32.totalorder %s9, 1
    %p40 = por %p38, %p39
    %p41 = scmp.ne.s32.totalorder %s33, %s36
    %p42 = scmp.eq.s32.totalorder %s9, 0
    %p43 = por %p41, %p42
    %p44 = scmp.ne.s32.totalorder %s33, %s36
    %p45 = scmp.eq.s32.totalorder %s14, 1
    %p46 = por %p44, %p45
    %p47 = scmp.ne.s32.totalorder %s36, %s37
    %p48 = scmp.eq.s32.totalorder %s14, 0
    %p49 = por %p47, %p48
    %p50 = scmp.ne.s32.totalorder %s36, %s37
    %p51 = scmp.eq.s32.totalorder %s15, 1
    %p52 = por %p50, %p51
    %p54 = scmp.ne.s32.totalorder %s37, %s53
    %p55 = scmp.eq.s32.totalorder %s15, 0
    %p56 = por %p54, %p55
    %s58 = sadd.s32 %s57, 1
    %p61 = scmp.eq.s32.totalorder %s9, 1
    %p62 = scmp.ne.s32.totalorder %s57, %s59
    %p63 = scmp.eq.s32.totalorder %s9, 0
    %p64 = por %p62, %p63
    %p65 = scmp.ne.s32.totalorder %s57, %s59
    %p66 = scmp.eq.s32.totalorder %s14, 1
    %p67 = por %p65, %p66
    %p68 = scmp.ne.s32.totalorder %s59, %s60
    %p69 = scmp.eq.s32.totalorder %s14, 0
    %p70 = por %p68, %p69
    %p71 = scmp.ne.s32.totalorder %s59, %s60
    %p72 = scmp.eq.s32.totalorder %s15, 1
    %p73 = por %p71, %p72
    %p75 = scmp.ne.s32.totalorder %s60, %s74
    %p76 = scmp.eq.s32.totalorder %s15, 0
    %p77 = por %p75, %p76
    %s79 = sadd.s32 %s78, 1
    %p82 = scmp.eq.s32.totalorder %s9, 1
    %p83 = scmp.ne.s32.totalorder %s78, %s80
    %p84 = scmp.eq.s32.totalorder %s9, 0
    %p85 = por %p83, %p84
    %p86 = scmp.ne.s32.totalorder %s78, %s80
    %p87 = scmp.eq.s32.totalorder %s14, 1
    %p88 = por %p86, %p87
    %p89 = scmp.ne.s32.totalorder %s80, %s81
    %p90 = scmp.eq.s32.totalorder %s14, 0
    %p91 = por %p89, %p90
    %p92 = scmp.ne.s32.totalorder %s80, %s81
    %p93 = scmp.eq.s32.totalorder %s15, 1
    %p94 = por %p92, %p93
    %p96 = scmp.ne.s32.totalorder %s81, %s95
    %p97 = scmp.eq.s32.totalorder %s15, 0
    %p98 = por %p96, %p97
    %s99 = ssub.s32 %s16, %s28
    %s100 = ssub.s32 %s17, %s24
    %s101 = sor.u32 %s99, %s100
    %p102 = scmp.eq.s32.totalorder %s101, 0
    %s104 = sadd.s32 %s103, 1
    %s105 = scalar_select %p102, %s103, %s104
    %p108 = pneg %p102
    %p109 = scmp.eq.s32.totalorder %s9, 1
    %p110 = por %p108, %p109
    %p111 = scmp.ne.s32.totalorder %s103, %s106
    %p112 = scmp.eq.s32.totalorder %s9, 0
    %p113 = por %p111, %p112
    %p114 = scmp.ne.s32.totalorder %s103, %s106
    %p115 = scmp.eq.s32.totalorder %s14, 1
    %p116 = por %p114, %p115
    %p117 = scmp.ne.s32.totalorder %s106, %s107
    %p118 = scmp.eq.s32.totalorder %s14, 0
    %p119 = por %p117, %p118
    %p120 = scmp.ne.s32.totalorder %s106, %s107
    %p121 = scmp.eq.s32.totalorder %s15, 1
    %p122 = por %p120, %p121
    %p124 = scmp.ne.s32.totalorder %s107, %s123
    %p125 = scmp.eq.s32.totalorder %s15, 0
    %p126 = por %p124, %p125
    %p127 = scmp.le.s32.totalorder 1, %s9
    %p128 = scmp.lt.s32.totalorder %s9, 3
    %p129 = pnand %p127, %p128
    %p130 = pneg %p129
    // Predicated region
    $region9: #{tpu_custom_call.1} parent=5 // pred_check
      _
    $region10: #{tpu_custom_call.1} parent=5 // pred_check_branch
      %132 = sbr.rel (%p129) target = $region12
    $region11: #{tpu_custom_call.1} parent=5 // pred_region
      %s133 = ssub.s32 %s9, 1
      // Predicated region
      $region13: #{tpu_custom_call.1} parent=11 // pred_check
        %p134 = pneg %p70
      $region14: #{tpu_custom_call.1} parent=11 // pred_check_branch
        %136 = sbr.rel (%p134) target = $region16
      $region15: #{tpu_custom_call.1} parent=11 // pred_region
        _
      $region16: #{tpu_custom_call.1} parent=11 // pred_fallthru
        _
      // Predicated region
      $region17: #{tpu_custom_call.1} parent=11 // pred_check
        %p137 = pneg %p91
      $region18: #{tpu_custom_call.1} parent=11 // pred_check_branch
        %139 = sbr.rel (%p137) target = $region20
      $region19: #{tpu_custom_call.1} parent=11 // pred_region
        _
      $region20: #{tpu_custom_call.1} parent=11 // pred_fallthru
        _
    $region12: #{tpu_custom_call.1} parent=5 // pred_fallthru
      _
    %p140 = scmp.lt.s32.totalorder %s9, 2
    // Predicated region
    $region21: #{tpu_custom_call.1} parent=5 // pred_check
      %p141 = pneg %p140
    $region22: #{tpu_custom_call.1} parent=5 // pred_check_branch
      %143 = sbr.rel (%p141) target = $region24
    $region23: #{tpu_custom_call.1} parent=5 // pred_region
      // Predicated region
      $region25: #{tpu_custom_call.1} parent=23 // pred_check
        %p144 = pneg %p43
      $region26: #{tpu_custom_call.1} parent=23 // pred_check_branch
        %146 = sbr.rel (%p144) target = $region28
      $region27: #{tpu_custom_call.1} parent=23 // pred_region
        %p147 = scmp.lt.s32.totalorder %s16, 1
        %s148 = scalar_select %p147, %s16, 1
        %p149 = scmp.lt.s32.totalorder %s17, 0
        %s150 = scalar_select %p149, %s17, 0
        %s151 = smul.addr %s148, 4
        %s152 = sadd.s32 %s150, %s151
        %s153 = smul.addr %s152, 8
        %s154 = scalar_lea.vmem %s0, %s153
      $region28: #{tpu_custom_call.1} parent=23 // pred_fallthru
        _
    $region24: #{tpu_custom_call.1} parent=5 // pred_fallthru
      _
    %p155 = scmp.le.s32.totalorder 1, %s9
    %p156 = scmp.lt.s32.totalorder %s9, 3
    %p157 = pnand %p155, %p156
    %p158 = pneg %p157
    // Predicated region
    $region29: #{tpu_custom_call.1} parent=5 // pred_check
      _
    $region30: #{tpu_custom_call.1} parent=5 // pred_check_branch
      %160 = sbr.rel (%p157) target = $region32
    $region31: #{tpu_custom_call.1} parent=5 // pred_region
      %s161 = ssub.s32 %s9, 1
      %p162 = scmp.lt.s32.totalorder %s18, 1
      %s163 = scalar_select %p162, %s18, 1
      %p164 = scmp.lt.s32.totalorder %s19, 0
      %s165 = scalar_select %p164, %s19, 0
      %s166 = smul.addr %s163, 4
      %s167 = sadd.s32 %s165, %s166
      %s168 = smul.addr %s167, 8
      %s169 = scalar_lea.vmem %s0, %s168
      %p170 = pneg %p49
      %p171 = pneg %p46
      %p172 = pneg %p70
      %p173 = pneg %p67
      %p174 = pneg %p91
      %p175 = pneg %p88
      %p176 = pneg %p119
      %p177 = pneg %p116
      %p178 = scmp.lt.s32.totalorder %s18, 1
      %s179 = scalar_select %p178, %s18, 1
      %p180 = scmp.lt.s32.totalorder %s19, 0
      %s181 = scalar_select %p180, %s19, 0
      %s182 = smul.addr %s179, 4
      %s183 = sadd.s32 %s181, %s182
      %s184 = smul.addr %s183, 8
      %s185 = scalar_lea.vmem %s3, %s184
      %p186 = scmp.lt.s32.totalorder %s18, 1
      %s187 = scalar_select %p186, %s18, 1
      %p188 = scmp.lt.s32.totalorder %s19, 0
      %s189 = scalar_select %p188, %s19, 0
      %s190 = smul.addr %s187, 4
      %s191 = sadd.s32 %s189, %s190
      %s192 = smul.addr %s191, 8
      %s193 = scalar_lea.vmem %s0, %s192
      %p194 = scmp.lt.s32.totalorder %s18, 1
      %s195 = scalar_select %p194, %s18, 1
      %p196 = scmp.lt.s32.totalorder %s19, 0
      %s197 = scalar_select %p196, %s19, 0
      %s198 = smul.addr %s195, 4
      %s199 = sadd.s32 %s197, %s198
      %s200 = smul.addr %s199, 8
      %s201 = scalar_lea.vmem %s3, %s200
      %v203 = vld [vmem:[%s1] sm:$0xf]
      %v204 = vld [vmem:[%s1 + $0x4] sm:$0xf]
      %v205 = vld [vmem:[%s1 + $0x8] sm:$0xf]
      %v206 = vld [vmem:[%s1 + $0xc] sm:$0xf]
      %v207 = vld [vmem:[%s2] sm:$0xff]
      %v208 = vld [vmem:[%s2 + $0x8] sm:$0xff]
      %v209 = vld [vmem:[%s2 + $0x10] sm:$0xff]
      %v210 = vld [vmem:[%s2 + $0x18] sm:$0xff]
      %v211 = vld [vmem:[%s193] sm:$0xff]
      %v212 = vld [vmem:[%s193 + $0x8] sm:$0xff]
      %v213 = vld [vmem:[%s193 + $0x10] sm:$0xff]
      %v214 = vld [vmem:[%s193 + $0x18] sm:$0xff]
      %v215 = vpack.c.bf16 %v212, %v211
      %v216 = vpack.c.bf16 %v214, %v213
      %218 = vset.pattern.permute.xlu0 0
      %219 = vperm.xlu0 %218, %v207
      %v220 = vpop.permute.xlu0 %219
      %223 = vset.pattern.permute.xlu0 0
      %224 = vperm.xlu0 %223, %v208
      %v225 = vpop.permute.xlu0 %224
      %228 = vset.pattern.permute.xlu0 0
      %229 = vperm.xlu0 %228, %v209
      %v230 = vpop.permute.xlu0 %229
      %233 = vset.pattern.permute.xlu0 0
      %234 = vperm.xlu0 %233, %v210
      %v235 = vpop.permute.xlu0 %234
      %v241 = vunpack.c.l.b16 %v203
      %v242 = vunpack.c.l.b16 %v204
      %v243 = vunpack.c.l.b16 %v205
      %v244 = vunpack.c.l.b16 %v206
      %v245 = vpack.c.b16 %v242, %v241
      %v246 = vpack.c.b16 %v244, %v243
      %vm247 = vcmask 261120
      %v249 = vsel %vm247, %v245, 0
      %v252 = vsel %vm247, %v246, 0
      %254 = vmatprep.subr.bf16.mxu0 0
      %255 = vmatpush1.bf16.msra.mxu0 %v215
      %256 = vmatprep.subr.bf16.mxu0 0
      %257 = vmatpush1.bf16.msra.mxu0 %v216
      %258 = vmatprep.subr.bf16.mxu0 0
      %259 = vmatpush1.bf16.msra.mxu0 0
      %260 = vmatprep.subr.bf16.mxu0 0
      %261 = vmatpush1.bf16.msra.mxu0 0
      %262 = vmatprep.subr.bf16.mxu0 0
      %263 = vmatpush1.bf16.msra.mxu0 0
      %264 = vmatprep.subr.bf16.mxu0 0
      %265 = vmatpush1.bf16.msra.mxu0 0
      %266 = vmatprep.subr.bf16.mxu0 0
      %267 = vmatpush1.bf16.msra.mxu0 0
      %268 = vmatprep.subr.bf16.mxu0 0
      %269 = vmatpush1.bf16.msra.mxu0 0
      %270 = vmatprep.subr.bf16.mxu0 0
      %271 = vmatpush1.bf16.msra.mxu0 0
      %272 = vmatprep.subr.bf16.mxu0 0
      %273 = vmatpush1.bf16.msra.mxu0 0
      %274 = vmatprep.subr.bf16.mxu0 0
      %275 = vmatpush1.bf16.msra.mxu0 0
      %276 = vmatprep.subr.bf16.mxu0 0
      %277 = vmatpush1.bf16.msra.mxu0 0
      %278 = vmatprep.subr.bf16.mxu0 0
      %279 = vmatpush1.bf16.msra.mxu0 0
      %280 = vmatprep.subr.bf16.mxu0 0
      %281 = vmatpush1.bf16.msra.mxu0 0
      %282 = vmatprep.subr.bf16.mxu0 0
      %283 = vmatpush1.bf16.msra.mxu0 0
      %284 = vmatprep.subr.bf16.mxu0 0
      %285 = vmatpush1.bf16.msra.mxu0 0
      %286 = vmatprep.mubr.bf16.mxu0 0
      %287 = vmatmul.mubr.bf16.gmra.mrb[0].mxu0 %v249
      %v288 = vpop.f32.mrb[0].mxu0
      %v289 = vadd.f32 %v220, %v288
      %v290 = vpop.f32.mrb[0].mxu0
      %v291 = vpop.f32.mrb[0].mxu0
      %v292 = vadd.f32 %v225, %v291
      %v293 = vpop.f32.mrb[0].mxu0
      %294 = vmatprep.mubr.bf16.mxu0 0
      %295 = vmatmul.mubr.bf16.gmra.mrb[0].mxu0 %v252
      %v296 = vpop.f32.mrb[0].mxu0
      %v297 = vadd.f32 %v230, %v296
      %v298 = vpop.f32.mrb[0].mxu0
      %v299 = vpop.f32.mrb[0].mxu0
      %v300 = vadd.f32 %v235, %v299
      %v301 = vpop.f32.mrb[0].mxu0
      %302 = vdwg.mxu0
      %v303 = vmax.f32 %v289, 0.0
      %v304 = vmax.f32 %v292, 0.0
      %v305 = vmax.f32 %v297, 0.0
      %v306 = vmax.f32 %v300, 0.0
      %v307 = vpack.c.bf16 %v304, %v303
      %v308 = vpack.c.bf16 %v306, %v305
      %309 = vmatprep.subr.bf16.mxu0 0
      %310 = vmatpush1.bf16.msra.mxu0 %v307
      %311 = vmatprep.subr.bf16.mxu0 0
      %312 = vmatpush1.bf16.msra.mxu0 %v308
      %313 = vmatprep.subr.bf16.mxu0 0
      %314 = vmatpush1.bf16.msra.mxu0 0
      %315 = vmatprep.subr.bf16.mxu0 0
      %316 = vmatpush1.bf16.msra.mxu0 0
      %317 = vmatprep.subr.bf16.mxu0 0
      %318 = vmatpush1.bf16.msra.mxu0 0
      %319 = vmatprep.subr.bf16.mxu0 0
      %320 = vmatpush1.bf16.msra.mxu0 0
      %321 = vmatprep.subr.bf16.mxu0 0
      %322 = vmatpush1.bf16.msra.mxu0 0
      %323 = vmatprep.subr.bf16.mxu0 0
      %324 = vmatpush1.bf16.msra.mxu0 0
      %325 = vmatprep.subr.bf16.mxu0 0
      %326 = vmatpush1.bf16.msra.mxu0 0
      %327 = vmatprep.subr.bf16.mxu0 0
      %328 = vmatpush1.bf16.msra.mxu0 0
      %329 = vmatprep.subr.bf16.mxu0 0
      %330 = vmatpush1.bf16.msra.mxu0 0
      %331 = vmatprep.subr.bf16.mxu0 0
      %332 = vmatpush1.bf16.msra.mxu0 0
      %333 = vmatprep.subr.bf16.mxu0 0
      %334 = vmatpush1.bf16.msra.mxu0 0
      %335 = vmatprep.subr.bf16.mxu0 0
      %336 = vmatpush1.bf16.msra.mxu0 0
      %337 = vmatprep.subr.bf16.mxu0 0
      %338 = vmatpush1.bf16.msra.mxu0 0
      %339 = vmatprep.subr.bf16.mxu0 0
      %340 = vmatpush1.bf16.msra.mxu0 0
      %341 = vmatprep.mubr.bf16.mxu0 0
      %342 = vmatmul.mubr.bf16.gmra.mrb[0].mxu0 %v249
      %v343 = vpop.f32.mrb[0].mxu0
      %v344 = vadd.f32 %v220, %v343
      %v345 = vpop.f32.mrb[0].mxu0
      %v346 = vpop.f32.mrb[0].mxu0
      %v347 = vadd.f32 %v225, %v346
      %v348 = vpop.f32.mrb[0].mxu0
      %349 = vmatprep.mubr.bf16.mxu0 0
      %350 = vmatmul.mubr.bf16.gmra.mrb[0].mxu0 %v252
      %v351 = vpop.f32.mrb[0].mxu0
      %v352 = vadd.f32 %v230, %v351
      %v353 = vpop.f32.mrb[0].mxu0
      %v354 = vpop.f32.mrb[0].mxu0
      %v355 = vadd.f32 %v235, %v354
      %v356 = vpop.f32.mrb[0].mxu0
      %357 = vdwg.mxu0
      %v358 = vmax.f32 %v344, 0.0
      %v359 = vmax.f32 %v347, 0.0
      %v360 = vmax.f32 %v352, 0.0
      %v361 = vmax.f32 %v355, 0.0
      %v362 = vpack.c.bf16 %v359, %v358
      %v363 = vpack.c.bf16 %v361, %v360
      %364 = vmatprep.subr.bf16.mxu0 0
      %365 = vmatpush1.bf16.msra.mxu0 %v362
      %366 = vmatprep.subr.bf16.mxu0 0
      %367 = vmatpush1.bf16.msra.mxu0 %v363
      %368 = vmatprep.subr.bf16.mxu0 0
      %369 = vmatpush1.bf16.msra.mxu0 0
      %370 = vmatprep.subr.bf16.mxu0 0
      %371 = vmatpush1.bf16.msra.mxu0 0
      %372 = vmatprep.subr.bf16.mxu0 0
      %373 = vmatpush1.bf16.msra.mxu0 0
      %374 = vmatprep.subr.bf16.mxu0 0
      %375 = vmatpush1.bf16.msra.mxu0 0
      %376 = vmatprep.subr.bf16.mxu0 0
      %377 = vmatpush1.bf16.msra.mxu0 0
      %378 = vmatprep.subr.bf16.mxu0 0
      %379 = vmatpush1.bf16.msra.mxu0 0
      %380 = vmatprep.subr.bf16.mxu0 0
      %381 = vmatpush1.bf16.msra.mxu0 0
      %382 = vmatprep.subr.bf16.mxu0 0
      %383 = vmatpush1.bf16.msra.mxu0 0
      %384 = vmatprep.subr.bf16.mxu0 0
      %385 = vmatpush1.bf16.msra.mxu0 0
      %386 = vmatprep.subr.bf16.mxu0 0
      %387 = vmatpush1.bf16.msra.mxu0 0
      %388 = vmatprep.subr.bf16.mxu0 0
      %389 = vmatpush1.bf16.msra.mxu0 0
      %390 = vmatprep.subr.bf16.mxu0 0
      %391 = vmatpush1.bf16.msra.mxu0 0
      %392 = vmatprep.subr.bf16.mxu0 0
      %393 = vmatpush1.bf16.msra.mxu0 0
      %394 = vmatprep.subr.bf16.mxu0 0
      %395 = vmatpush1.bf16.msra.mxu0 0
      %396 = vmatprep.mubr.bf16.mxu0 0
      %397 = vmatmul.mubr.bf16.gmra.mrb[0].mxu0 %v249
      %v398 = vpop.f32.mrb[0].mxu0
      %v399 = vadd.f32 %v220, %v398
      %v400 = vpop.f32.mrb[0].mxu0
      %v401 = vpop.f32.mrb[0].mxu0
      %v402 = vadd.f32 %v225, %v401
      %v403 = vpop.f32.mrb[0].mxu0
      %404 = vmatprep.mubr.bf16.mxu0 0
      %405 = vmatmul.mubr.bf16.gmra.mrb[0].mxu0 %v252
      %v406 = vpop.f32.mrb[0].mxu0
      %v407 = vadd.f32 %v230, %v406
      %v408 = vpop.f32.mrb[0].mxu0
      %v409 = vpop.f32.mrb[0].mxu0
      %v410 = vadd.f32 %v235, %v409
      %v411 = vpop.f32.mrb[0].mxu0
      %412 = vdwg.mxu0
      %v413 = vadd.f32 %v399, %v211
      %v414 = vadd.f32 %v402, %v212
      %v415 = vadd.f32 %v407, %v213
      %v416 = vadd.f32 %v410, %v214
      %v417 = vmax.f32 %v413, 0.0
      %v418 = vmax.f32 %v414, 0.0
      %v419 = vmax.f32 %v415, 0.0
      %v420 = vmax.f32 %v416, 0.0
      %vm421 = vcmask 130048
      %422 = vst.msk [vmem:[%s201] sm:$0xff] %vm421, %v417
      %423 = vst.msk [vmem:[%s201 + $0x8] sm:$0xff] %vm421, %v418
      %424 = vst.msk [vmem:[%s201 + $0x10] sm:$0xff] %vm421, %v419
      %425 = vst.msk [vmem:[%s201 + $0x18] sm:$0xff] %vm421, %v420
      %p426 = scmp.lt.s32.totalorder %s18, 1
      %s427 = scalar_select %p426, %s18, 1
      %p428 = scmp.lt.s32.totalorder %s19, 0
      %s429 = scalar_select %p428, %s19, 0
      %s430 = smul.addr %s427, 4
      %s431 = sadd.s32 %s429, %s430
      %s432 = smul.addr %s431, 8
      %s433 = scalar_lea.vmem %s3, %s432
      // Predicated region
      $region33: #{tpu_custom_call.1} parent=31 // pred_check
        %p434 = pneg %p116
      $region34: #{tpu_custom_call.1} parent=31 // pred_check_branch
        %436 = sbr.rel (%p434) target = $region36
      $region35: #{tpu_custom_call.1} parent=31 // pred_region
        _
      $region36: #{tpu_custom_call.1} parent=31 // pred_fallthru
        _
    $region32: #{tpu_custom_call.1} parent=5 // pred_fallthru
      _
    %p437 = scmp.le.s32.totalorder 2, %s9
    // Predicated region
    $region37: #{tpu_custom_call.1} parent=5 // pred_check
      %p438 = pneg %p437
    $region38: #{tpu_custom_call.1} parent=5 // pred_check_branch
      %440 = sbr.rel (%p438) target = $region40
    $region39: #{tpu_custom_call.1} parent=5 // pred_region
      %s441 = ssub.s32 %s9, 2
      // Predicated region
      $region41: #{tpu_custom_call.1} parent=39 // pred_check
        %p442 = pneg %p122
      $region42: #{tpu_custom_call.1} parent=39 // pred_check_branch
        %444 = sbr.rel (%p442) target = $region44
      $region43: #{tpu_custom_call.1} parent=39 // pred_region
        %p445 = scmp.lt.s32.totalorder %s20, 1
        %s446 = scalar_select %p445, %s20, 1
        %p447 = scmp.lt.s32.totalorder %s21, 0
        %s448 = scalar_select %p447, %s21, 0
        %s449 = smul.addr %s446, 4
        %s450 = sadd.s32 %s448, %s449
        %s451 = smul.addr %s450, 8
        %s452 = scalar_lea.vmem %s3, %s451
      $region44: #{tpu_custom_call.1} parent=39 // pred_fallthru
        _
    $region40: #{tpu_custom_call.1} parent=5 // pred_fallthru
      _
  $region6: #{tpu_custom_call.1} parent=0 // loop_footer
    %s13 = sadd.s32 1, %s9
  $region7: #{tpu_custom_call.1} parent=0 // loop_footer_branch
    %8 = sbr.rel target = $region3
  $region8: #{tpu_custom_call.1} parent=0 // loop_exit
    _

</llo_original>
